<compile_context>
chip_gen: v6e
topology: v6e:2x2x1
jax: 0.10.0
libtpu: 0.0.40
codegen_flags: <defaults>
</compile_context>

<pallas_src>
import functools

import jax
import jax.numpy as jnp
from jax.experimental import pallas as pl
from jax.experimental.pallas import tpu as pltpu

EPS = 1e-5  # PyTorch InstanceNorm2d default


def _tap_table(Wo):
    """(kh, kw) tap -> (phase index, static lane offset into the flattened plane)."""
    taps = []
    for kh in range(3):
        for kw in range(3):
            rp = 0 if kh == 1 else 1            # row phase: even rows iff kh == 1
            cp = 0 if kw == 1 else 1            # col phase: even cols iff kw == 1
            di = 0 if kh == 0 else 1            # haloed-row offset
            dj = 0 if kw == 0 else 1            # haloed-col offset
            taps.append((rp * 2 + cp, di * (Wo + 1) + dj))
    return tuple(taps)


def convblock_kernel(f_ref, w_ref, smask_ref, out_ref, *, taps, lv):
    # f_ref:     (1, 4, C_in, L)   4 zero-haloed polyphase planes, spatial flattened
    # w_ref:     (9, C_out, C_in)  conv weight, tap-major (kh*3 + kw)
    # smask_ref: (1, Lv)           valid_mask / (Ho*Wo): 0 for junk lanes
    # out_ref:   (1, C_out, Lv)    C-major, spatial-last (lane-dense) output
    smask = smask_ref[...]

    # Load each polyphase plane once; taps are cheap static lane-shifted views.
    planes = [f_ref[0, p] for p in range(4)]                    # each (C_in, L)

    # Accumulating MXU matmuls over the 9 taps; seed from tap 0.
    p0, s0 = taps[0]
    acc = jnp.dot(w_ref[0], planes[p0][:, s0:s0 + lv],
                  preferred_element_type=jnp.float32)           # (C_out, Lv)
    for t in range(1, 9):
        p, s = taps[t]
        acc = acc + jnp.dot(w_ref[t], planes[p][:, s:s + lv],
                            preferred_element_type=jnp.float32)

    # Conv bias intentionally omitted: InstanceNorm2d(affine=False) subtracts
    # the per-channel mean immediately after, so the bias cancels exactly.

    # InstanceNorm2d over the spatial axis (junk lanes masked out of the
    # stats; 1/count folded into smask), then ReLU.  All stats math in f32.
    mean = jnp.sum(acc * smask, axis=1, keepdims=True)                  # (C_out, 1)
    centered = acc - mean
    var = jnp.sum(centered * centered * smask, axis=1, keepdims=True)   # (C_out, 1)
    y = jnp.maximum(centered * jax.lax.rsqrt(var + EPS), 0.0)
    out_ref[0] = y.astype(out_ref.dtype)


def conv_block_forward(x, weight, bias=None, *, feed_dtype=jnp.float32):
    """x: (N, C_in, H, W); weight: (C_out, C_in, 3, 3) -> (N, C_out, ceil(H/2), ceil(W/2)).

    `bias` is accepted for API parity but unused (it cancels under InstanceNorm).
    `feed_dtype=jnp.bfloat16` halves streamed HBM traffic on v6e/v7x (norm stays f32).
    """
    del bias
    N, C_in, H, W = x.shape
    C_out = weight.shape[0]
    Ho, Wo = -(-H // 2), -(-W // 2)             # ceil: matches Conv2d(k=3, s=2, p=1)
    He, We = 2 * Ho, 2 * Wo

    xf = x.astype(jnp.float32)
    xf = jnp.pad(xf, ((0, 0), (0, 0), (0, He - H), (0, We - W)))

    # Polyphase split: 4 planes of (N, C_in, Ho, Wo) -- total size ~= the input.
    phases = jnp.stack(
        [xf[:, :, 0::2, 0::2], xf[:, :, 0::2, 1::2],
         xf[:, :, 1::2, 0::2], xf[:, :, 1::2, 1::2]], axis=1)   # (N, 4, C_in, Ho, Wo)
    # Zero halo (1 row top/bottom, 1 col left), then flatten spatial row-major.
    phases = jnp.pad(phases, ((0, 0), (0, 0), (0, 0), (1, 1), (1, 0)))
    L = (Ho + 2) * (Wo + 1)
    Lv = Ho * (Wo + 1)
    F = phases.reshape(N, 4, C_in, L).astype(feed_dtype)

    # weight[co, ci, kh, kw] -> (9, C_out, C_in), tap-major.
    w_taps = jnp.transpose(weight.astype(feed_dtype), (2, 3, 0, 1)).reshape(9, C_out, C_in)

    # Every (Wo+1)-th lane of each output row is a wrap-around junk element.
    # Pre-scale by 1/(Ho*Wo) so the kernel's reductions need no extra multiply.
    valid = (jnp.arange(Lv, dtype=jnp.int32) % (Wo + 1) < Wo).astype(jnp.float32)
    smask = (valid / float(Ho * Wo)).reshape(1, Lv)

    kernel = functools.partial(convblock_kernel, taps=_tap_table(Wo), lv=Lv)

    out = pl.pallas_call(
        kernel,
        out_shape=jax.ShapeDtypeStruct((N, C_out, Lv), jnp.float32),
        grid_spec=pltpu.PrefetchScalarGridSpec(
            num_scalar_prefetch=0,
            grid=(N,),
            in_specs=[
                pl.BlockSpec((1, 4, C_in, L), lambda n: (n, 0, 0, 0)),
                pl.BlockSpec((9, C_out, C_in), lambda n: (0, 0, 0)),
                pl.BlockSpec((1, Lv), lambda n: (0, 0)),
            ],
            out_specs=pl.BlockSpec((1, C_out, Lv), lambda n: (n, 0, 0)),
        ),
        compiler_params=pltpu.CompilerParams(
            dimension_semantics=("parallel",),          # v7x: 2 TCs split the batch
            vmem_limit_bytes=64 * 1024 * 1024,
        ),
    )(F, w_taps, smask)

    # (N, C_out, Ho*(Wo+1)) -> (N, C_out, Ho, Wo): drop the per-row junk lane.
    return out.reshape(N, C_out, Ho, Wo + 1)[:, :, :, :Wo]


def _reference(x, weight, bias):
    """Plain-JAX reference of the same forward pass (for correctness check)."""
    y = jax.lax.conv_general_dilated(
        x.astype(jnp.float32), weight.astype(jnp.float32),
        window_strides=(2, 2), padding=((1, 1), (1, 1)),
        dimension_numbers=("NCHW", "OIHW", "NCHW"))
    y = y + bias.reshape(1, -1, 1, 1)
    mean = jnp.mean(y, axis=(2, 3), keepdims=True)
    var = jnp.mean((y - mean) ** 2, axis=(2, 3), keepdims=True)
    y = (y - mean) * jax.lax.rsqrt(var + EPS)
    return jnp.maximum(y, 0.0)


def _run_case(key, N, C_in, C_out, H, W):
    kx, kw, kb = jax.random.split(key, 3)
    x = jax.random.normal(kx, (N, C_in, H, W), dtype=jnp.float32)
    fan_in = C_in * 3 * 3
    bound = 1.0 / (fan_in ** 0.5)
    weight = jax.random.uniform(kw, (C_out, C_in, 3, 3), jnp.float32, -bound, bound)
    bias = jax.random.uniform(kb, (C_out,), jnp.float32, -bound, bound)

    out = jax.block_until_ready(conv_block_forward(x, weight, bias))
    ref = jax.block_until_ready(_reference(x, weight, bias))
    Ho, Wo = -(-H // 2), -(-W // 2)
    assert out.shape == (N, C_out, Ho, Wo), out.shape
    err = float(jnp.max(jnp.abs(out - ref)))
    assert jnp.allclose(out, ref, atol=1e-4, rtol=1e-4), err


if __name__ == "__main__":
    key = jax.random.PRNGKey(0)
    k0, k1 = jax.random.split(key, 2)
    # Small shapes consistent with the module: batch=2, in_ch=4, out_ch=8, spatial=16
    _run_case(k0, N=2, C_in=4, C_out=8, H=16, W=16)
    # Odd spatial size (exercises the ceil(H/2) output-size path).
    _run_case(k1, N=1, C_in=3, C_out=5, H=9, W=9)

    print("KERNEL_OK")
</pallas_src>

<mosaic_0001>
module attributes {stable_mosaic.version = 11 : i64} {
  func.func @convblock_kernel(%arg0: i32, %arg1: memref<1x4x4x90xf32, #tpu.memory_space<vmem>>, %arg2: memref<9x8x4xf32, #tpu.memory_space<vmem>>, %arg3: memref<1x72xf32, #tpu.memory_space<vmem>>, %arg4: memref<1x8x72xf32, #tpu.memory_space<vmem>>) attributes {dimension_semantics = [#tpu.dimension_semantics<parallel>], iteration_bounds = array<i64: 2>, scalar_prefetch = 0 : i64, scratch_operands = 0 : i64, tpu.core_type = #tpu.core_type<tc>, window_params = [{transform_indices = @transform_0, window_bounds = array<i64: 1, 4, 4, 90>}, {pipeline_mode = #tpu.pipeline_mode<synchronous>, transform_indices = @transform_1, window_bounds = array<i64: 9, 8, 4>}, {pipeline_mode = #tpu.pipeline_mode<synchronous>, transform_indices = @transform_2, window_bounds = array<i64: 1, 72>}, {transform_indices = @transform_3, window_bounds = array<i64: 1, 8, 72>}]} {
    %c0 = arith.constant 0 : index
    %c0_0 = arith.constant 0 : index
    %0 = vector.load %arg3[%c0, %c0_0] : memref<1x72xf32, #tpu.memory_space<vmem>>, vector<1x72xf32>
    %c0_1 = arith.constant 0 : index
    %c0_2 = arith.constant 0 : index
    %c0_3 = arith.constant 0 : index
    %c0_4 = arith.constant 0 : index
    %1 = vector.load %arg1[%c0_1, %c0_2, %c0_3, %c0_4] : memref<1x4x4x90xf32, #tpu.memory_space<vmem>>, vector<1x1x4x90xf32>
    %2 = vector.shape_cast %1 : vector<1x1x4x90xf32> to vector<4x90xf32>
    %c0_5 = arith.constant 0 : index
    %c1 = arith.constant 1 : index
    %c0_6 = arith.constant 0 : index
    %c0_7 = arith.constant 0 : index
    %3 = vector.load %arg1[%c0_5, %c1, %c0_6, %c0_7] : memref<1x4x4x90xf32, #tpu.memory_space<vmem>>, vector<1x1x4x90xf32>
    %4 = vector.shape_cast %3 : vector<1x1x4x90xf32> to vector<4x90xf32>
    %c0_8 = arith.constant 0 : index
    %c2 = arith.constant 2 : index
    %c0_9 = arith.constant 0 : index
    %c0_10 = arith.constant 0 : index
    %5 = vector.load %arg1[%c0_8, %c2, %c0_9, %c0_10] : memref<1x4x4x90xf32, #tpu.memory_space<vmem>>, vector<1x1x4x90xf32>
    %6 = vector.shape_cast %5 : vector<1x1x4x90xf32> to vector<4x90xf32>
    %c0_11 = arith.constant 0 : index
    %c3 = arith.constant 3 : index
    %c0_12 = arith.constant 0 : index
    %c0_13 = arith.constant 0 : index
    %7 = vector.load %arg1[%c0_11, %c3, %c0_12, %c0_13] : memref<1x4x4x90xf32, #tpu.memory_space<vmem>>, vector<1x1x4x90xf32>
    %8 = vector.shape_cast %7 : vector<1x1x4x90xf32> to vector<4x90xf32>
    %c0_14 = arith.constant 0 : index
    %c0_15 = arith.constant 0 : index
    %c0_16 = arith.constant 0 : index
    %9 = vector.load %arg2[%c0_14, %c0_15, %c0_16] : memref<9x8x4xf32, #tpu.memory_space<vmem>>, vector<1x8x4xf32>
    %10 = vector.shape_cast %9 : vector<1x8x4xf32> to vector<8x4xf32>
    %11 = vector.extract_strided_slice %8 {offsets = [0, 0], sizes = [4, 72], strides = [1, 1]} : vector<4x90xf32> to vector<4x72xf32>
    %cst = arith.constant dense<0.000000e+00> : vector<8x72xf32>
    %12 = tpu.matmul %10, %11, %cst {dimension_numbers = #tpu.dot_dimension_numbers<[1], [0], [0], [1], [0, 0, 1, 1], [], []>} : vector<8x4xf32>, vector<4x72xf32>, vector<8x72xf32> -> vector<8x72xf32>
    %c1_17 = arith.constant 1 : index
    %c0_18 = arith.constant 0 : index
    %c0_19 = arith.constant 0 : index
    %13 = vector.load %arg2[%c1_17, %c0_18, %c0_19] : memref<9x8x4xf32, #tpu.memory_space<vmem>>, vector<1x8x4xf32>
    %14 = vector.shape_cast %13 : vector<1x8x4xf32> to vector<8x4xf32>
    %15 = vector.extract_strided_slice %6 {offsets = [0, 1], sizes = [4, 72], strides = [1, 1]} : vector<4x90xf32> to vector<4x72xf32>
    %cst_20 = arith.constant dense<0.000000e+00> : vector<8x72xf32>
    %16 = tpu.matmul %14, %15, %cst_20 {dimension_numbers = #tpu.dot_dimension_numbers<[1], [0], [0], [1], [0, 0, 1, 1], [], []>} : vector<8x4xf32>, vector<4x72xf32>, vector<8x72xf32> -> vector<8x72xf32>
    %17 = arith.addf %12, %16 : vector<8x72xf32>
    %c2_21 = arith.constant 2 : index
    %c0_22 = arith.constant 0 : index
    %c0_23 = arith.constant 0 : index
    %18 = vector.load %arg2[%c2_21, %c0_22, %c0_23] : memref<9x8x4xf32, #tpu.memory_space<vmem>>, vector<1x8x4xf32>
    %19 = vector.shape_cast %18 : vector<1x8x4xf32> to vector<8x4xf32>
    %20 = vector.extract_strided_slice %8 {offsets = [0, 1], sizes = [4, 72], strides = [1, 1]} : vector<4x90xf32> to vector<4x72xf32>
    %cst_24 = arith.constant dense<0.000000e+00> : vector<8x72xf32>
    %21 = tpu.matmul %19, %20, %cst_24 {dimension_numbers = #tpu.dot_dimension_numbers<[1], [0], [0], [1], [0, 0, 1, 1], [], []>} : vector<8x4xf32>, vector<4x72xf32>, vector<8x72xf32> -> vector<8x72xf32>
    %22 = arith.addf %17, %21 : vector<8x72xf32>
    %c3_25 = arith.constant 3 : index
    %c0_26 = arith.constant 0 : index
    %c0_27 = arith.constant 0 : index
    %23 = vector.load %arg2[%c3_25, %c0_26, %c0_27] : memref<9x8x4xf32, #tpu.memory_space<vmem>>, vector<1x8x4xf32>
    %24 = vector.shape_cast %23 : vector<1x8x4xf32> to vector<8x4xf32>
    %25 = vector.extract_strided_slice %4 {offsets = [0, 9], sizes = [4, 72], strides = [1, 1]} : vector<4x90xf32> to vector<4x72xf32>
    %cst_28 = arith.constant dense<0.000000e+00> : vector<8x72xf32>
    %26 = tpu.matmul %24, %25, %cst_28 {dimension_numbers = #tpu.dot_dimension_numbers<[1], [0], [0], [1], [0, 0, 1, 1], [], []>} : vector<8x4xf32>, vector<4x72xf32>, vector<8x72xf32> -> vector<8x72xf32>
    %27 = arith.addf %22, %26 : vector<8x72xf32>
    %c4 = arith.constant 4 : index
    %c0_29 = arith.constant 0 : index
    %c0_30 = arith.constant 0 : index
    %28 = vector.load %arg2[%c4, %c0_29, %c0_30] : memref<9x8x4xf32, #tpu.memory_space<vmem>>, vector<1x8x4xf32>
    %29 = vector.shape_cast %28 : vector<1x8x4xf32> to vector<8x4xf32>
    %30 = vector.extract_strided_slice %2 {offsets = [0, 10], sizes = [4, 72], strides = [1, 1]} : vector<4x90xf32> to vector<4x72xf32>
    %cst_31 = arith.constant dense<0.000000e+00> : vector<8x72xf32>
    %31 = tpu.matmul %29, %30, %cst_31 {dimension_numbers = #tpu.dot_dimension_numbers<[1], [0], [0], [1], [0, 0, 1, 1], [], []>} : vector<8x4xf32>, vector<4x72xf32>, vector<8x72xf32> -> vector<8x72xf32>
    %32 = arith.addf %27, %31 : vector<8x72xf32>
    %c5 = arith.constant 5 : index
    %c0_32 = arith.constant 0 : index
    %c0_33 = arith.constant 0 : index
    %33 = vector.load %arg2[%c5, %c0_32, %c0_33] : memref<9x8x4xf32, #tpu.memory_space<vmem>>, vector<1x8x4xf32>
    %34 = vector.shape_cast %33 : vector<1x8x4xf32> to vector<8x4xf32>
    %35 = vector.extract_strided_slice %4 {offsets = [0, 10], sizes = [4, 72], strides = [1, 1]} : vector<4x90xf32> to vector<4x72xf32>
    %cst_34 = arith.constant dense<0.000000e+00> : vector<8x72xf32>
    %36 = tpu.matmul %34, %35, %cst_34 {dimension_numbers = #tpu.dot_dimension_numbers<[1], [0], [0], [1], [0, 0, 1, 1], [], []>} : vector<8x4xf32>, vector<4x72xf32>, vector<8x72xf32> -> vector<8x72xf32>
    %37 = arith.addf %32, %36 : vector<8x72xf32>
    %c6 = arith.constant 6 : index
    %c0_35 = arith.constant 0 : index
    %c0_36 = arith.constant 0 : index
    %38 = vector.load %arg2[%c6, %c0_35, %c0_36] : memref<9x8x4xf32, #tpu.memory_space<vmem>>, vector<1x8x4xf32>
    %39 = vector.shape_cast %38 : vector<1x8x4xf32> to vector<8x4xf32>
    %40 = vector.extract_strided_slice %8 {offsets = [0, 9], sizes = [4, 72], strides = [1, 1]} : vector<4x90xf32> to vector<4x72xf32>
    %cst_37 = arith.constant dense<0.000000e+00> : vector<8x72xf32>
    %41 = tpu.matmul %39, %40, %cst_37 {dimension_numbers = #tpu.dot_dimension_numbers<[1], [0], [0], [1], [0, 0, 1, 1], [], []>} : vector<8x4xf32>, vector<4x72xf32>, vector<8x72xf32> -> vector<8x72xf32>
    %42 = arith.addf %37, %41 : vector<8x72xf32>
    %c7 = arith.constant 7 : index
    %c0_38 = arith.constant 0 : index
    %c0_39 = arith.constant 0 : index
    %43 = vector.load %arg2[%c7, %c0_38, %c0_39] : memref<9x8x4xf32, #tpu.memory_space<vmem>>, vector<1x8x4xf32>
    %44 = vector.shape_cast %43 : vector<1x8x4xf32> to vector<8x4xf32>
    %45 = vector.extract_strided_slice %6 {offsets = [0, 10], sizes = [4, 72], strides = [1, 1]} : vector<4x90xf32> to vector<4x72xf32>
    %cst_40 = arith.constant dense<0.000000e+00> : vector<8x72xf32>
    %46 = tpu.matmul %44, %45, %cst_40 {dimension_numbers = #tpu.dot_dimension_numbers<[1], [0], [0], [1], [0, 0, 1, 1], [], []>} : vector<8x4xf32>, vector<4x72xf32>, vector<8x72xf32> -> vector<8x72xf32>
    %47 = arith.addf %42, %46 : vector<8x72xf32>
    %c8 = arith.constant 8 : index
    %c0_41 = arith.constant 0 : index
    %c0_42 = arith.constant 0 : index
    %48 = vector.load %arg2[%c8, %c0_41, %c0_42] : memref<9x8x4xf32, #tpu.memory_space<vmem>>, vector<1x8x4xf32>
    %49 = vector.shape_cast %48 : vector<1x8x4xf32> to vector<8x4xf32>
    %50 = vector.extract_strided_slice %8 {offsets = [0, 10], sizes = [4, 72], strides = [1, 1]} : vector<4x90xf32> to vector<4x72xf32>
    %cst_43 = arith.constant dense<0.000000e+00> : vector<8x72xf32>
    %51 = tpu.matmul %49, %50, %cst_43 {dimension_numbers = #tpu.dot_dimension_numbers<[1], [0], [0], [1], [0, 0, 1, 1], [], []>} : vector<8x4xf32>, vector<4x72xf32>, vector<8x72xf32> -> vector<8x72xf32>
    %52 = arith.addf %47, %51 : vector<8x72xf32>
    %53 = vector.broadcast %0 : vector<1x72xf32> to vector<8x72xf32>
    %54 = arith.mulf %52, %53 : vector<8x72xf32>
    %cst_44 = arith.constant dense<0.000000e+00> : vector<8xf32>
    %55 = vector.multi_reduction <add>, %54, %cst_44 [1] : vector<8x72xf32> to vector<8xf32>
    %56 = vector.shape_cast %55 : vector<8xf32> to vector<8x1xf32>
    %57 = vector.broadcast %56 : vector<8x1xf32> to vector<8x72xf32>
    %58 = arith.subf %52, %57 : vector<8x72xf32>
    %59 = arith.mulf %58, %58 : vector<8x72xf32>
    %60 = vector.broadcast %0 : vector<1x72xf32> to vector<8x72xf32>
    %61 = arith.mulf %59, %60 : vector<8x72xf32>
    %cst_45 = arith.constant dense<0.000000e+00> : vector<8xf32>
    %62 = vector.multi_reduction <add>, %61, %cst_45 [1] : vector<8x72xf32> to vector<8xf32>
    %63 = vector.shape_cast %62 : vector<8xf32> to vector<8x1xf32>
    %cst_46 = arith.constant 9.99999974E-6 : f32
    %64 = vector.broadcast %cst_46 : f32 to vector<8x1xf32>
    %65 = arith.addf %63, %64 : vector<8x1xf32>
    %66 = math.rsqrt %65 : vector<8x1xf32>
    %67 = vector.broadcast %66 : vector<8x1xf32> to vector<8x72xf32>
    %68 = arith.mulf %58, %67 : vector<8x72xf32>
    %cst_47 = arith.constant 0.000000e+00 : f32
    %69 = vector.broadcast %cst_47 : f32 to vector<8x72xf32>
    %70 = arith.maximumf %68, %69 : vector<8x72xf32>
    %c0_48 = arith.constant 0 : index
    %c0_49 = arith.constant 0 : index
    %c0_50 = arith.constant 0 : index
    %71 = vector.load %arg4[%c0_48, %c0_49, %c0_50] : memref<1x8x72xf32, #tpu.memory_space<vmem>>, vector<1x8x72xf32>
    %72 = vector.shape_cast %71 : vector<1x8x72xf32> to vector<8x72xf32>
    %73 = vector.shape_cast %70 : vector<8x72xf32> to vector<1x8x72xf32>
    tpu.vector_store %arg4[%c0_48, %c0_49, %c0_50], %73 {strides = array<i32>} : memref<1x8x72xf32, #tpu.memory_space<vmem>>, vector<1x8x72xf32>,
    return
  }
  func.func @transform_0(%arg0: i32) -> (i32, i32, i32, i32) {
    %c0_i32 = arith.constant 0 : i32
    %c0_i32_0 = arith.constant 0 : i32
    %c0_i32_1 = arith.constant 0 : i32
    %c0_i32_2 = arith.constant 0 : i32
    return %arg0, %c0_i32, %c0_i32_0, %c0_i32_1 : i32, i32, i32, i32
  }
  func.func @transform_1(%arg0: i32) -> (i32, i32, i32) {
    %c0_i32 = arith.constant 0 : i32
    %c0_i32_0 = arith.constant 0 : i32
    %c0_i32_1 = arith.constant 0 : i32
    %c0_i32_2 = arith.constant 0 : i32
    return %c0_i32, %c0_i32_0, %c0_i32_1 : i32, i32, i32
  }
  func.func @transform_2(%arg0: i32) -> (i32, i32) {
    %c0_i32 = arith.constant 0 : i32
    %c0_i32_0 = arith.constant 0 : i32
    %c0_i32_1 = arith.constant 0 : i32
    return %c0_i32, %c0_i32_0 : i32, i32
  }
  func.func @transform_3(%arg0: i32) -> (i32, i32, i32) {
    %c0_i32 = arith.constant 0 : i32
    %c0_i32_0 = arith.constant 0 : i32
    %c0_i32_1 = arith.constant 0 : i32
    return %arg0, %c0_i32, %c0_i32_0 : i32, i32, i32
  }
}

</mosaic_0001>

<llo_original>
// kernel: tpu_custom_call.1
$region0: #{tpu_custom_call.1}
  #allocation0 [shape = 'u32[]', space=smem, size = 0x4, offset = 0x4, fixed_abs, tag = 'smem constant byte address 0x4 - core index']
  #allocation1 [shape = 'u32[144,128]{1,0:T(1,128)}', space=vmem, size = 0x12000, scoped, tag = 'internal scratch']
  %s0 = inlined_call_operand.vmem [shape: f32[2,4,4,90], index: 0, kind: input, shape index: {}]
  %s1 = inlined_call_operand.vmem [shape: f32[9,8,4], index: 1, kind: input, shape index: {}]
  %s2 = inlined_call_operand.vmem [shape: f32[1,72], index: 2, kind: input, shape index: {}]
  %s3 = inlined_call_operand.hbm [shape: f32[2,8,72], index: 3, kind: output, shape index: {}]
  %s4 = sld [smem:[#allocation0]]
  $region45: #{tpu_custom_call.1} parent=0
    _
  %s6 = ssub.s32 1, %s4
  %s7 = scalar_select 0, %s6, %s4
  $region1: #{tpu_custom_call.1} parent=0
    #allocation2 [shape = 'u8[8192]{0}', space=vmem, size = 0x2000, scoped, tag = 'output window, operand 0']
    #allocation3 [shape = 's32[2]{0}', space=sflag, size = 0x8, scoped, tag = 'scoped memory for tpu_custom_call.1']
    %8 = vsyncpa [#allocation3], 0
    %s9 = scalar_lea.sflag [#allocation3], 1
    %10 = vsyncpa %s9, 0
    loop: start=0, step=1, limit=4
    $region2: #{tpu_custom_call.1} parent=1 // loop_pre_header
      _
    $region3: #{tpu_custom_call.1} parent=1 // loop_header
      %s12 = sphi 0, %s16
      %p13 = scmp.ge.s32.totalorder %s12, 4
      %s22 = sphi 0, %s24
      %s25 = sphi 0, %s22
      %s26 = sphi 0, %s25
      %s42 = sphi 0, %s26
      %s46 = sphi 0, %s46
      %s48 = sphi 0, %s46
      %s49 = sphi 0, %s48
      %s63 = sphi 0, %s49
      %s67 = sphi 0, %s67
      %s69 = sphi 0, %s67
      %s70 = sphi 0, %s69
      %s84 = sphi 0, %s70
      %s90 = sphi 0, %s92
      %s93 = sphi 0, %s90
      %s94 = sphi 0, %s93
      %s110 = sphi 0, %s94
    $region4: #{tpu_custom_call.1} parent=1 // loop_header_branch
      %15 = sbr.rel (%p13) target = $region8
    $region5: #{tpu_custom_call.1} parent=1 // loop_body
      %s17 = ssub.s32 %s12, 1
      %s18 = ssub.s32 %s12, 2
      %s19 = sadd.s32 %s12, 1
      %s20 = ssub.s32 %s12, %s19
      %p21 = scmp.eq.s32.totalorder %s20, 0
      %s23 = sadd.s32 %s22, 1
      %s24 = scalar_select %p21, %s22, %s23
      %p27 = pneg %p21
      %p28 = scmp.eq.s32.totalorder %s12, 1
      %p29 = por %p27, %p28
      %p30 = scmp.ne.s32.totalorder %s22, %s25
      %p31 = scmp.eq.s32.totalorder %s12, 0
      %p32 = por %p30, %p31
      %p33 = scmp.ne.s32.totalorder %s22, %s25
      %p34 = scmp.eq.s32.totalorder %s17, 1
      %p35 = por %p33, %p34
      %p36 = scmp.ne.s32.totalorder %s25, %s26
      %p37 = scmp.eq.s32.totalorder %s17, 0
      %p38 = por %p36, %p37
      %p39 = scmp.ne.s32.totalorder %s25, %s26
      %p40 = scmp.eq.s32.totalorder %s18, 1
      %p41 = por %p39, %p40
      %p43 = scmp.ne.s32.totalorder %s26, %s42
      %p44 = scmp.eq.s32.totalorder %s18, 0
      %p45 = por %p43, %p44
      %s47 = sadd.s32 %s46, 1
      %p50 = scmp.eq.s32.totalorder %s12, 1
      %p51 = scmp.ne.s32.totalorder %s46, %s48
      %p52 = scmp.eq.s32.totalorder %s12, 0
      %p53 = por %p51, %p52
      %p54 = scmp.ne.s32.totalorder %s46, %s48
      %p55 = scmp.eq.s32.totalorder %s17, 1
      %p56 = por %p54, %p55
      %p57 = scmp.ne.s32.totalorder %s48, %s49
      %p58 = scmp.eq.s32.totalorder %s17, 0
      %p59 = por %p57, %p58
      %p60 = scmp.ne.s32.totalorder %s48, %s49
      %p61 = scmp.eq.s32.totalorder %s18, 1
      %p62 = por %p60, %p61
      %p64 = scmp.ne.s32.totalorder %s49, %s63
      %p65 = scmp.eq.s32.totalorder %s18, 0
      %p66 = por %p64, %p65
      %s68 = sadd.s32 %s67, 1
      %p71 = scmp.eq.s32.totalorder %s12, 1
      %p72 = scmp.ne.s32.totalorder %s67, %s69
      %p73 = scmp.eq.s32.totalorder %s12, 0
      %p74 = por %p72, %p73
      %p75 = scmp.ne.s32.totalorder %s67, %s69
      %p76 = scmp.eq.s32.totalorder %s17, 1
      %p77 = por %p75, %p76
      %p78 = scmp.ne.s32.totalorder %s69, %s70
      %p79 = scmp.eq.s32.totalorder %s17, 0
      %p80 = por %p78, %p79
      %p81 = scmp.ne.s32.totalorder %s69, %s70
      %p82 = scmp.eq.s32.totalorder %s18, 1
      %p83 = por %p81, %p82
      %p85 = scmp.ne.s32.totalorder %s70, %s84
      %p86 = scmp.eq.s32.totalorder %s18, 0
      %p87 = por %p85, %p86
      %s88 = ssub.s32 %s12, %s19
      %p89 = scmp.eq.s32.totalorder %s88, 0
      %s91 = sadd.s32 %s90, 1
      %s92 = scalar_select %p89, %s90, %s91
      %p95 = pneg %p89
      %p96 = scmp.eq.s32.totalorder %s12, 1
      %p97 = por %p95, %p96
      %p98 = scmp.ne.s32.totalorder %s90, %s93
      %p99 = scmp.eq.s32.totalorder %s12, 0
      %p100 = por %p98, %p99
      %p101 = scmp.ne.s32.totalorder %s90, %s93
      %p102 = scmp.eq.s32.totalorder %s17, 1
      %p103 = por %p101, %p102
      %p104 = scmp.ne.s32.totalorder %s93, %s94
      %p105 = scmp.eq.s32.totalorder %s17, 0
      %p106 = por %p104, %p105
      %p107 = scmp.ne.s32.totalorder %s93, %s94
      %p108 = scmp.eq.s32.totalorder %s18, 1
      %p109 = por %p107, %p108
      %p111 = scmp.ne.s32.totalorder %s94, %s110
      %p112 = scmp.eq.s32.totalorder %s18, 0
      %p113 = por %p111, %p112
      %p114 = scmp.le.s32.totalorder 1, %s12
      %p115 = scmp.lt.s32.totalorder %s12, 3
      %p116 = pnand %p114, %p115
      %p117 = pneg %p116
      // Predicated region
      $region9: #{tpu_custom_call.1} parent=5 // pred_check
        _
      $region10: #{tpu_custom_call.1} parent=5 // pred_check_branch
        %119 = sbr.rel (%p116) target = $region12
      $region11: #{tpu_custom_call.1} parent=5 // pred_region
        %s120 = ssub.s32 %s12, 1
        // Predicated region
        $region13: #{tpu_custom_call.1} parent=11 // pred_check
          %p121 = pneg %p59
        $region14: #{tpu_custom_call.1} parent=11 // pred_check_branch
          %123 = sbr.rel (%p121) target = $region16
        $region15: #{tpu_custom_call.1} parent=11 // pred_region
          _
        $region16: #{tpu_custom_call.1} parent=11 // pred_fallthru
          _
        // Predicated region
        $region17: #{tpu_custom_call.1} parent=11 // pred_check
          %p124 = pneg %p80
        $region18: #{tpu_custom_call.1} parent=11 // pred_check_branch
          %126 = sbr.rel (%p124) target = $region20
        $region19: #{tpu_custom_call.1} parent=11 // pred_region
          _
        $region20: #{tpu_custom_call.1} parent=11 // pred_fallthru
          _
      $region12: #{tpu_custom_call.1} parent=5 // pred_fallthru
        _
      %p127 = scmp.lt.s32.totalorder %s12, 2
      // Predicated region
      $region21: #{tpu_custom_call.1} parent=5 // pred_check
        %p128 = pneg %p127
      $region22: #{tpu_custom_call.1} parent=5 // pred_check_branch
        %130 = sbr.rel (%p128) target = $region24
      $region23: #{tpu_custom_call.1} parent=5 // pred_region
        // Predicated region
        $region25: #{tpu_custom_call.1} parent=23 // pred_check
          %p131 = pneg %p32
        $region26: #{tpu_custom_call.1} parent=23 // pred_check_branch
          %133 = sbr.rel (%p131) target = $region28
        $region27: #{tpu_custom_call.1} parent=23 // pred_region
          %p134 = scmp.lt.s32.totalorder %s12, 1
          %s135 = scalar_select %p134, %s12, 1
          %s136 = smul.addr %s135, 4
          %s137 = smul.addr %s136, 4
          %s138 = scalar_lea.vmem %s0, %s137
        $region28: #{tpu_custom_call.1} parent=23 // pred_fallthru
          _
      $region24: #{tpu_custom_call.1} parent=5 // pred_fallthru
        _
      %p139 = scmp.le.s32.totalorder 1, %s12
      %p140 = scmp.lt.s32.totalorder %s12, 3
      %p141 = pnand %p139, %p140
      %p142 = pneg %p141
      // Predicated region
      $region29: #{tpu_custom_call.1} parent=5 // pred_check
        _
      $region30: #{tpu_custom_call.1} parent=5 // pred_check_branch
        %144 = sbr.rel (%p141) target = $region32
      $region31: #{tpu_custom_call.1} parent=5 // pred_region
        %s145 = ssub.s32 %s12, 1
        %p146 = scmp.lt.s32.totalorder %s17, 1
        %s147 = scalar_select %p146, %s17, 1
        %s148 = smul.addr %s147, 4
        %s149 = smul.addr %s148, 4
        %s150 = scalar_lea.vmem %s0, %s149
        %p151 = pneg %p38
        %p152 = pneg %p35
        %p153 = pneg %p59
        %p154 = pneg %p56
        %p155 = pneg %p80
        %p156 = pneg %p77
        %p157 = pneg %p106
        %p158 = pneg %p103
        %s159 = sand.u32 %s93, 1
        %s160 = scalar_lea.sflag [#allocation3], %s159
        %s161 = sand.u32 %s93, 1
        %s162 = smul.addr %s161, 8
        %s163 = scalar_lea.vmem [#allocation2], %s162
        %p164 = scmp.lt.s32.totalorder %s17, 1
        %s165 = scalar_select %p164, %s17, 1
        %s166 = smul.addr %s165, 4
        %s167 = smul.addr %s166, 4
        %s168 = scalar_lea.vmem %s0, %s167
        %v169 = vld [vmem:[%s2] sm:$0x1]
        %v170 = vld [vmem:[%s168] sm:$0xf]
        %s171 = scalar_lea.vmem %s168, 4
        %v172 = vld [vmem:[%s171] sm:$0xf]
        %s173 = scalar_lea.vmem %s168, 8
        %v174 = vld [vmem:[%s173] sm:$0xf]
        %s175 = scalar_lea.vmem %s168, 12
        %v176 = vld [vmem:[%s175] sm:$0xf]
        %v177 = vld [vmem:[%s1] sm:$0xff]
        %s178 = scalar_lea.vmem %s1, 8
        %v179 = vld [vmem:[%s178] sm:$0xff]
        %181 = vrot.lane.b32.xlu0 %v174, 127
        %v182 = vpop.permute.xlu0 %181
        %vm183 = vcmask 31744
        %v185 = vsel %vm183, %v179, 0
        %vm187 = vcmask 1043456
        %v188 = vsel %vm187, %v182, 0
        %190 = vmatprep.subr.mxu0 0.0
        %191 = vmatpush1.msra.mxu0 0.0
        %192 = vmatprep.subr.mxu0 0.0
        %193 = vmatpush1.msra.mxu0 0.0
        %194 = vmatprep.subr.mxu0 0.0
        %195 = vmatpush1.msra.mxu0 0.0
        %196 = vmatprep.subr.mxu0 0.0
        %197 = vmatpush1.msra.mxu0 0.0
        %198 = vmatprep.subr.mxu0 0.0
        %199 = vmatpush1.msra.mxu0 0.0
        %200 = vmatprep.subr.mxu0 0.0
        %201 = vmatpush1.msra.mxu0 0.0
        %202 = vmatprep.subr.mxu0 0.0
        %203 = vmatpush1.msra.mxu0 0.0
        %204 = vmatprep.subr.mxu0 0.0
        %205 = vmatpush1.msra.mxu0 0.0
        %206 = vmatprep.subr.mxu0 0.0
        %207 = vmatpush1.msra.mxu0 0.0
        %208 = vmatprep.subr.mxu0 0.0
        %209 = vmatpush1.msra.mxu0 0.0
        %210 = vmatprep.subr.mxu0 0.0
        %211 = vmatpush1.msra.mxu0 0.0
        %212 = vmatprep.subr.mxu0 0.0
        %213 = vmatpush1.msra.mxu0 0.0
        %214 = vmatprep.subr.mxu0 0.0
        %215 = vmatpush1.msra.mxu0 0.0
        %216 = vmatprep.subr.mxu0 0.0
        %217 = vmatpush1.msra.mxu0 0.0
        %218 = vmatprep.subr.mxu0 0.0
        %219 = vmatpush1.msra.mxu0 0.0
        %220 = vmatprep.subr.mxu0 0.0
        %221 = vmatpush1.msra.mxu0 %v188
        %222 = vmatprep.subr.mxu0 0.0
        %223 = vmatpush2.msra.mxu0 0.0
        %224 = vmatprep.subr.mxu0 0.0
        %225 = vmatpush2.msra.mxu0 0.0
        %226 = vmatprep.subr.mxu0 0.0
        %227 = vmatpush2.msra.mxu0 0.0
        %228 = vmatprep.subr.mxu0 0.0
        %229 = vmatpush2.msra.mxu0 0.0
        %230 = vmatprep.subr.mxu0 0.0
        %231 = vmatpush2.msra.mxu0 0.0
        %232 = vmatprep.subr.mxu0 0.0
        %233 = vmatpush2.msra.mxu0 0.0
        %234 = vmatprep.subr.mxu0 0.0
        %235 = vmatpush2.msra.mxu0 0.0
        %236 = vmatprep.subr.mxu0 0.0
        %237 = vmatpush2.msra.mxu0 0.0
        %238 = vmatprep.subr.mxu0 0.0
        %239 = vmatpush2.msra.mxu0 0.0
        %240 = vmatprep.subr.mxu0 0.0
        %241 = vmatpush2.msra.mxu0 0.0
        %242 = vmatprep.subr.mxu0 0.0
        %243 = vmatpush2.msra.mxu0 0.0
        %244 = vmatprep.subr.mxu0 0.0
        %245 = vmatpush2.msra.mxu0 0.0
        %246 = vmatprep.subr.mxu0 0.0
        %247 = vmatpush2.msra.mxu0 0.0
        %248 = vmatprep.subr.mxu0 0.0
        %249 = vmatpush2.msra.mxu0 0.0
        %250 = vmatprep.subr.mxu0 0.0
        %251 = vmatpush2.msra.mxu0 0.0
        %252 = vmatprep.subr.mxu0 0.0
        %253 = vmatpush2.msra.mxu0 0.0
        %254 = vmatprep.mubr.f32.mxu0 0.0
        %255 = vmatmul.mubr.f32.gmra.mxu0 %v185
        %v256 = vpop.f32.mrf.mxu0
        %v257 = vadd.f32 0.0, %v256
        %v258 = vpop.f32.mrf.mxu0
        %259 = vdwg.mxu0
        %v261 = vsel %vm183, %v177, 0
        %v264 = vsel %vm187, %v176, 0
        %266 = vmatprep.subr.mxu0 0.0
        %267 = vmatpush1.msra.mxu0 0.0
        %268 = vmatprep.subr.mxu0 0.0
        %269 = vmatpush1.msra.mxu0 0.0
        %270 = vmatprep.subr.mxu0 0.0
        %271 = vmatpush1.msra.mxu0 0.0
        %272 = vmatprep.subr.mxu0 0.0
        %273 = vmatpush1.msra.mxu0 0.0
        %274 = vmatprep.subr.mxu0 0.0
        %275 = vmatpush1.msra.mxu0 0.0
        %276 = vmatprep.subr.mxu0 0.0
        %277 = vmatpush1.msra.mxu0 0.0
        %278 = vmatprep.subr.mxu0 0.0
        %279 = vmatpush1.msra.mxu0 0.0
        %280 = vmatprep.subr.mxu0 0.0
        %281 = vmatpush1.msra.mxu0 0.0
        %282 = vmatprep.subr.mxu0 0.0
        %283 = vmatpush1.msra.mxu0 0.0
        %284 = vmatprep.subr.mxu0 0.0
        %285 = vmatpush1.msra.mxu0 0.0
        %286 = vmatprep.subr.mxu0 0.0
        %287 = vmatpush1.msra.mxu0 0.0
        %288 = vmatprep.subr.mxu0 0.0
        %289 = vmatpush1.msra.mxu0 0.0
        %290 = vmatprep.subr.mxu0 0.0
        %291 = vmatpush1.msra.mxu0 0.0
        %292 = vmatprep.subr.mxu0 0.0
        %293 = vmatpush1.msra.mxu0 0.0
        %294 = vmatprep.subr.mxu0 0.0
        %295 = vmatpush1.msra.mxu0 0.0
        %296 = vmatprep.subr.mxu0 0.0
        %297 = vmatpush1.msra.mxu0 %v264
        %298 = vmatprep.subr.mxu0 0.0
        %299 = vmatpush2.msra.mxu0 0.0
        %300 = vmatprep.subr.mxu0 0.0
        %301 = vmatpush2.msra.mxu0 0.0
        %302 = vmatprep.subr.mxu0 0.0
        %303 = vmatpush2.msra.mxu0 0.0
        %304 = vmatprep.subr.mxu0 0.0
        %305 = vmatpush2.msra.mxu0 0.0
        %306 = vmatprep.subr.mxu0 0.0
        %307 = vmatpush2.msra.mxu0 0.0
        %308 = vmatprep.subr.mxu0 0.0
        %309 = vmatpush2.msra.mxu0 0.0
        %310 = vmatprep.subr.mxu0 0.0
        %311 = vmatpush2.msra.mxu0 0.0
        %312 = vmatprep.subr.mxu0 0.0
        %313 = vmatpush2.msra.mxu0 0.0
        %314 = vmatprep.subr.mxu0 0.0
        %315 = vmatpush2.msra.mxu0 0.0
        %316 = vmatprep.subr.mxu0 0.0
        %317 = vmatpush2.msra.mxu0 0.0
        %318 = vmatprep.subr.mxu0 0.0
        %319 = vmatpush2.msra.mxu0 0.0
        %320 = vmatprep.subr.mxu0 0.0
        %321 = vmatpush2.msra.mxu0 0.0
        %322 = vmatprep.subr.mxu0 0.0
        %323 = vmatpush2.msra.mxu0 0.0
        %324 = vmatprep.subr.mxu0 0.0
        %325 = vmatpush2.msra.mxu0 0.0
        %326 = vmatprep.subr.mxu0 0.0
        %327 = vmatpush2.msra.mxu0 0.0
        %328 = vmatprep.subr.mxu0 0.0
        %329 = vmatpush2.msra.mxu0 0.0
        %330 = vmatprep.mubr.f32.mxu0 0.0
        %331 = vmatmul.mubr.f32.gmra.mxu0 %v261
        %v332 = vpop.f32.mrf.mxu0
        %v333 = vadd.f32 %v257, %v332
        %v334 = vpop.f32.mrf.mxu0
        %335 = vdwg.mxu0
        %s336 = scalar_lea.vmem %s1, 16
        %v337 = vld [vmem:[%s336] sm:$0xff]
        %338 = vrot.lane.b32.xlu0 %v176, 127
        %v339 = vpop.permute.xlu0 %338
        %v341 = vsel %vm183, %v337, 0
        %v343 = vsel %vm187, %v339, 0
        %345 = vmatprep.subr.mxu0 0.0
        %346 = vmatpush1.msra.mxu0 0.0
        %347 = vmatprep.subr.mxu0 0.0
        %348 = vmatpush1.msra.mxu0 0.0
        %349 = vmatprep.subr.mxu0 0.0
        %350 = vmatpush1.msra.mxu0 0.0
        %351 = vmatprep.subr.mxu0 0.0
        %352 = vmatpush1.msra.mxu0 0.0
        %353 = vmatprep.subr.mxu0 0.0
        %354 = vmatpush1.msra.mxu0 0.0
        %355 = vmatprep.subr.mxu0 0.0
        %356 = vmatpush1.msra.mxu0 0.0
        %357 = vmatprep.subr.mxu0 0.0
        %358 = vmatpush1.msra.mxu0 0.0
        %359 = vmatprep.subr.mxu0 0.0
        %360 = vmatpush1.msra.mxu0 0.0
        %361 = vmatprep.subr.mxu0 0.0
        %362 = vmatpush1.msra.mxu0 0.0
        %363 = vmatprep.subr.mxu0 0.0
        %364 = vmatpush1.msra.mxu0 0.0
        %365 = vmatprep.subr.mxu0 0.0
        %366 = vmatpush1.msra.mxu0 0.0
        %367 = vmatprep.subr.mxu0 0.0
        %368 = vmatpush1.msra.mxu0 0.0
        %369 = vmatprep.subr.mxu0 0.0
        %370 = vmatpush1.msra.mxu0 0.0
        %371 = vmatprep.subr.mxu0 0.0
        %372 = vmatpush1.msra.mxu0 0.0
        %373 = vmatprep.subr.mxu0 0.0
        %374 = vmatpush1.msra.mxu0 0.0
        %375 = vmatprep.subr.mxu0 0.0
        %376 = vmatpush1.msra.mxu0 %v343
        %377 = vmatprep.subr.mxu0 0.0
        %378 = vmatpush2.msra.mxu0 0.0
        %379 = vmatprep.subr.mxu0 0.0
        %380 = vmatpush2.msra.mxu0 0.0
        %381 = vmatprep.subr.mxu0 0.0
        %382 = vmatpush2.msra.mxu0 0.0
        %383 = vmatprep.subr.mxu0 0.0
        %384 = vmatpush2.msra.mxu0 0.0
        %385 = vmatprep.subr.mxu0 0.0
        %386 = vmatpush2.msra.mxu0 0.0
        %387 = vmatprep.subr.mxu0 0.0
        %388 = vmatpush2.msra.mxu0 0.0
        %389 = vmatprep.subr.mxu0 0.0
        %390 = vmatpush2.msra.mxu0 0.0
        %391 = vmatprep.subr.mxu0 0.0
        %392 = vmatpush2.msra.mxu0 0.0
        %393 = vmatprep.subr.mxu0 0.0
        %394 = vmatpush2.msra.mxu0 0.0
        %395 = vmatprep.subr.mxu0 0.0
        %396 = vmatpush2.msra.mxu0 0.0
        %397 = vmatprep.subr.mxu0 0.0
        %398 = vmatpush2.msra.mxu0 0.0
        %399 = vmatprep.subr.mxu0 0.0
        %400 = vmatpush2.msra.mxu0 0.0
        %401 = vmatprep.subr.mxu0 0.0
        %402 = vmatpush2.msra.mxu0 0.0
        %403 = vmatprep.subr.mxu0 0.0
        %404 = vmatpush2.msra.mxu0 0.0
        %405 = vmatprep.subr.mxu0 0.0
        %406 = vmatpush2.msra.mxu0 0.0
        %407 = vmatprep.subr.mxu0 0.0
        %408 = vmatpush2.msra.mxu0 0.0
        %409 = vmatprep.mubr.f32.mxu0 0.0
        %410 = vmatmul.mubr.f32.gmra.mxu0 %v341
        %v411 = vpop.f32.mrf.mxu0
        %v412 = vadd.f32 0.0, %v411
        %v413 = vpop.f32.mrf.mxu0
        %414 = vdwg.mxu0
        %v415 = vadd.f32 %v333, %v412
        %s416 = scalar_lea.vmem %s1, 24
        %v417 = vld [vmem:[%s416] sm:$0xff]
        %419 = vrot.lane.b32.xlu0 %v172, 119
        %v420 = vpop.permute.xlu0 %419
        %v422 = vsel %vm183, %v417, 0
        %v424 = vsel %vm187, %v420, 0
        %426 = vmatprep.subr.mxu0 0.0
        %427 = vmatpush1.msra.mxu0 0.0
        %428 = vmatprep.subr.mxu0 0.0
        %429 = vmatpush1.msra.mxu0 0.0
        %430 = vmatprep.subr.mxu0 0.0
        %431 = vmatpush1.msra.mxu0 0.0
        %432 = vmatprep.subr.mxu0 0.0
        %433 = vmatpush1.msra.mxu0 0.0
        %434 = vmatprep.subr.mxu0 0.0
        %435 = vmatpush1.msra.mxu0 0.0
        %436 = vmatprep.subr.mxu0 0.0
        %437 = vmatpush1.msra.mxu0 0.0
        %438 = vmatprep.subr.mxu0 0.0
        %439 = vmatpush1.msra.mxu0 0.0
        %440 = vmatprep.subr.mxu0 0.0
        %441 = vmatpush1.msra.mxu0 0.0
        %442 = vmatprep.subr.mxu0 0.0
        %443 = vmatpush1.msra.mxu0 0.0
        %444 = vmatprep.subr.mxu0 0.0
        %445 = vmatpush1.msra.mxu0 0.0
        %446 = vmatprep.subr.mxu0 0.0
        %447 = vmatpush1.msra.mxu0 0.0
        %448 = vmatprep.subr.mxu0 0.0
        %449 = vmatpush1.msra.mxu0 0.0
        %450 = vmatprep.subr.mxu0 0.0
        %451 = vmatpush1.msra.mxu0 0.0
        %452 = vmatprep.subr.mxu0 0.0
        %453 = vmatpush1.msra.mxu0 0.0
        %454 = vmatprep.subr.mxu0 0.0
        %455 = vmatpush1.msra.mxu0 0.0
        %456 = vmatprep.subr.mxu0 0.0
        %457 = vmatpush1.msra.mxu0 %v424
        %458 = vmatprep.subr.mxu0 0.0
        %459 = vmatpush2.msra.mxu0 0.0
        %460 = vmatprep.subr.mxu0 0.0
        %461 = vmatpush2.msra.mxu0 0.0
        %462 = vmatprep.subr.mxu0 0.0
        %463 = vmatpush2.msra.mxu0 0.0
        %464 = vmatprep.subr.mxu0 0.0
        %465 = vmatpush2.msra.mxu0 0.0
        %466 = vmatprep.subr.mxu0 0.0
        %467 = vmatpush2.msra.mxu0 0.0
        %468 = vmatprep.subr.mxu0 0.0
        %469 = vmatpush2.msra.mxu0 0.0
        %470 = vmatprep.subr.mxu0 0.0
        %471 = vmatpush2.msra.mxu0 0.0
        %472 = vmatprep.subr.mxu0 0.0
        %473 = vmatpush2.msra.mxu0 0.0
        %474 = vmatprep.subr.mxu0 0.0
        %475 = vmatpush2.msra.mxu0 0.0
        %476 = vmatprep.subr.mxu0 0.0
        %477 = vmatpush2.msra.mxu0 0.0
        %478 = vmatprep.subr.mxu0 0.0
        %479 = vmatpush2.msra.mxu0 0.0
        %480 = vmatprep.subr.mxu0 0.0
        %481 = vmatpush2.msra.mxu0 0.0
        %482 = vmatprep.subr.mxu0 0.0
        %483 = vmatpush2.msra.mxu0 0.0
        %484 = vmatprep.subr.mxu0 0.0
        %485 = vmatpush2.msra.mxu0 0.0
        %486 = vmatprep.subr.mxu0 0.0
        %487 = vmatpush2.msra.mxu0 0.0
        %488 = vmatprep.subr.mxu0 0.0
        %489 = vmatpush2.msra.mxu0 0.0
        %490 = vmatprep.mubr.f32.mxu0 0.0
        %491 = vmatmul.mubr.f32.gmra.mxu0 %v422
        %v492 = vpop.f32.mrf.mxu0
        %v493 = vadd.f32 0.0, %v492
        %v494 = vpop.f32.mrf.mxu0
        %495 = vdwg.mxu0
        %v496 = vadd.f32 %v415, %v493
        %s497 = scalar_lea.vmem %s1, 32
        %v498 = vld [vmem:[%s497] sm:$0xff]
        %500 = vrot.lane.b32.xlu0 %v170, 118
        %v501 = vpop.permute.xlu0 %500
        %v503 = vsel %vm183, %v498, 0
        %v505 = vsel %vm187, %v501, 0
        %507 = vmatprep.subr.mxu0 0.0
        %508 = vmatpush1.msra.mxu0 0.0
        %509 = vmatprep.subr.mxu0 0.0
        %510 = vmatpush1.msra.mxu0 0.0
        %511 = vmatprep.subr.mxu0 0.0
        %512 = vmatpush1.msra.mxu0 0.0
        %513 = vmatprep.subr.mxu0 0.0
        %514 = vmatpush1.msra.mxu0 0.0
        %515 = vmatprep.subr.mxu0 0.0
        %516 = vmatpush1.msra.mxu0 0.0
        %517 = vmatprep.subr.mxu0 0.0
        %518 = vmatpush1.msra.mxu0 0.0
        %519 = vmatprep.subr.mxu0 0.0
        %520 = vmatpush1.msra.mxu0 0.0
        %521 = vmatprep.subr.mxu0 0.0
        %522 = vmatpush1.msra.mxu0 0.0
        %523 = vmatprep.subr.mxu0 0.0
        %524 = vmatpush1.msra.mxu0 0.0
        %525 = vmatprep.subr.mxu0 0.0
        %526 = vmatpush1.msra.mxu0 0.0
        %527 = vmatprep.subr.mxu0 0.0
        %528 = vmatpush1.msra.mxu0 0.0
        %529 = vmatprep.subr.mxu0 0.0
        %530 = vmatpush1.msra.mxu0 0.0
        %531 = vmatprep.subr.mxu0 0.0
        %532 = vmatpush1.msra.mxu0 0.0
        %533 = vmatprep.subr.mxu0 0.0
        %534 = vmatpush1.msra.mxu0 0.0
        %535 = vmatprep.subr.mxu0 0.0
        %536 = vmatpush1.msra.mxu0 0.0
        %537 = vmatprep.subr.mxu0 0.0
        %538 = vmatpush1.msra.mxu0 %v505
        %539 = vmatprep.subr.mxu0 0.0
        %540 = vmatpush2.msra.mxu0 0.0
        %541 = vmatprep.subr.mxu0 0.0
        %542 = vmatpush2.msra.mxu0 0.0
        %543 = vmatprep.subr.mxu0 0.0
        %544 = vmatpush2.msra.mxu0 0.0
        %545 = vmatprep.subr.mxu0 0.0
        %546 = vmatpush2.msra.mxu0 0.0
        %547 = vmatprep.subr.mxu0 0.0
        %548 = vmatpush2.msra.mxu0 0.0
        %549 = vmatprep.subr.mxu0 0.0
        %550 = vmatpush2.msra.mxu0 0.0
        %551 = vmatprep.subr.mxu0 0.0
        %552 = vmatpush2.msra.mxu0 0.0
        %553 = vmatprep.subr.mxu0 0.0
        %554 = vmatpush2.msra.mxu0 0.0
        %555 = vmatprep.subr.mxu0 0.0
        %556 = vmatpush2.msra.mxu0 0.0
        %557 = vmatprep.subr.mxu0 0.0
        %558 = vmatpush2.msra.mxu0 0.0
        %559 = vmatprep.subr.mxu0 0.0
        %560 = vmatpush2.msra.mxu0 0.0
        %561 = vmatprep.subr.mxu0 0.0
        %562 = vmatpush2.msra.mxu0 0.0
        %563 = vmatprep.subr.mxu0 0.0
        %564 = vmatpush2.msra.mxu0 0.0
        %565 = vmatprep.subr.mxu0 0.0
        %566 = vmatpush2.msra.mxu0 0.0
        %567 = vmatprep.subr.mxu0 0.0
        %568 = vmatpush2.msra.mxu0 0.0
        %569 = vmatprep.subr.mxu0 0.0
        %570 = vmatpush2.msra.mxu0 0.0
        %571 = vmatprep.mubr.f32.mxu0 0.0
        %572 = vmatmul.mubr.f32.gmra.mxu0 %v503
        %v573 = vpop.f32.mrf.mxu0
        %v574 = vadd.f32 0.0, %v573
        %v575 = vpop.f32.mrf.mxu0
        %576 = vdwg.mxu0
        %v577 = vadd.f32 %v496, %v574
        %s578 = scalar_lea.vmem %s1, 40
        %v579 = vld [vmem:[%s578] sm:$0xff]
        %580 = vrot.lane.b32.xlu0 %v172, 118
        %v581 = vpop.permute.xlu0 %580
        %v583 = vsel %vm183, %v579, 0
        %v585 = vsel %vm187, %v581, 0
        %587 = vmatprep.subr.mxu0 0.0
        %588 = vmatpush1.msra.mxu0 0.0
        %589 = vmatprep.subr.mxu0 0.0
        %590 = vmatpush1.msra.mxu0 0.0
        %591 = vmatprep.subr.mxu0 0.0
        %592 = vmatpush1.msra.mxu0 0.0
        %593 = vmatprep.subr.mxu0 0.0
        %594 = vmatpush1.msra.mxu0 0.0
        %595 = vmatprep.subr.mxu0 0.0
        %596 = vmatpush1.msra.mxu0 0.0
        %597 = vmatprep.subr.mxu0 0.0
        %598 = vmatpush1.msra.mxu0 0.0
        %599 = vmatprep.subr.mxu0 0.0
        %600 = vmatpush1.msra.mxu0 0.0
        %601 = vmatprep.subr.mxu0 0.0
        %602 = vmatpush1.msra.mxu0 0.0
        %603 = vmatprep.subr.mxu0 0.0
        %604 = vmatpush1.msra.mxu0 0.0
        %605 = vmatprep.subr.mxu0 0.0
        %606 = vmatpush1.msra.mxu0 0.0
        %607 = vmatprep.subr.mxu0 0.0
        %608 = vmatpush1.msra.mxu0 0.0
        %609 = vmatprep.subr.mxu0 0.0
        %610 = vmatpush1.msra.mxu0 0.0
        %611 = vmatprep.subr.mxu0 0.0
        %612 = vmatpush1.msra.mxu0 0.0
        %613 = vmatprep.subr.mxu0 0.0
        %614 = vmatpush1.msra.mxu0 0.0
        %615 = vmatprep.subr.mxu0 0.0
        %616 = vmatpush1.msra.mxu0 0.0
        %617 = vmatprep.subr.mxu0 0.0
        %618 = vmatpush1.msra.mxu0 %v585
        %619 = vmatprep.subr.mxu0 0.0
        %620 = vmatpush2.msra.mxu0 0.0
        %621 = vmatprep.subr.mxu0 0.0
        %622 = vmatpush2.msra.mxu0 0.0
        %623 = vmatprep.subr.mxu0 0.0
        %624 = vmatpush2.msra.mxu0 0.0
        %625 = vmatprep.subr.mxu0 0.0
        %626 = vmatpush2.msra.mxu0 0.0
        %627 = vmatprep.subr.mxu0 0.0
        %628 = vmatpush2.msra.mxu0 0.0
        %629 = vmatprep.subr.mxu0 0.0
        %630 = vmatpush2.msra.mxu0 0.0
        %631 = vmatprep.subr.mxu0 0.0
        %632 = vmatpush2.msra.mxu0 0.0
        %633 = vmatprep.subr.mxu0 0.0
        %634 = vmatpush2.msra.mxu0 0.0
        %635 = vmatprep.subr.mxu0 0.0
        %636 = vmatpush2.msra.mxu0 0.0
        %637 = vmatprep.subr.mxu0 0.0
        %638 = vmatpush2.msra.mxu0 0.0
        %639 = vmatprep.subr.mxu0 0.0
        %640 = vmatpush2.msra.mxu0 0.0
        %641 = vmatprep.subr.mxu0 0.0
        %642 = vmatpush2.msra.mxu0 0.0
        %643 = vmatprep.subr.mxu0 0.0
        %644 = vmatpush2.msra.mxu0 0.0
        %645 = vmatprep.subr.mxu0 0.0
        %646 = vmatpush2.msra.mxu0 0.0
        %647 = vmatprep.subr.mxu0 0.0
        %648 = vmatpush2.msra.mxu0 0.0
        %649 = vmatprep.subr.mxu0 0.0
        %650 = vmatpush2.msra.mxu0 0.0
        %651 = vmatprep.mubr.f32.mxu0 0.0
        %652 = vmatmul.mubr.f32.gmra.mxu0 %v583
        %v653 = vpop.f32.mrf.mxu0
        %v654 = vadd.f32 0.0, %v653
        %v655 = vpop.f32.mrf.mxu0
        %656 = vdwg.mxu0
        %v657 = vadd.f32 %v577, %v654
        %s658 = scalar_lea.vmem %s1, 48
        %v659 = vld [vmem:[%s658] sm:$0xff]
        %660 = vrot.lane.b32.xlu0 %v176, 119
        %v661 = vpop.permute.xlu0 %660
        %v663 = vsel %vm183, %v659, 0
        %v665 = vsel %vm187, %v661, 0
        %667 = vmatprep.subr.mxu0 0.0
        %668 = vmatpush1.msra.mxu0 0.0
        %669 = vmatprep.subr.mxu0 0.0
        %670 = vmatpush1.msra.mxu0 0.0
        %671 = vmatprep.subr.mxu0 0.0
        %672 = vmatpush1.msra.mxu0 0.0
        %673 = vmatprep.subr.mxu0 0.0
        %674 = vmatpush1.msra.mxu0 0.0
        %675 = vmatprep.subr.mxu0 0.0
        %676 = vmatpush1.msra.mxu0 0.0
        %677 = vmatprep.subr.mxu0 0.0
        %678 = vmatpush1.msra.mxu0 0.0
        %679 = vmatprep.subr.mxu0 0.0
        %680 = vmatpush1.msra.mxu0 0.0
        %681 = vmatprep.subr.mxu0 0.0
        %682 = vmatpush1.msra.mxu0 0.0
        %683 = vmatprep.subr.mxu0 0.0
        %684 = vmatpush1.msra.mxu0 0.0
        %685 = vmatprep.subr.mxu0 0.0
        %686 = vmatpush1.msra.mxu0 0.0
        %687 = vmatprep.subr.mxu0 0.0
        %688 = vmatpush1.msra.mxu0 0.0
        %689 = vmatprep.subr.mxu0 0.0
        %690 = vmatpush1.msra.mxu0 0.0
        %691 = vmatprep.subr.mxu0 0.0
        %692 = vmatpush1.msra.mxu0 0.0
        %693 = vmatprep.subr.mxu0 0.0
        %694 = vmatpush1.msra.mxu0 0.0
        %695 = vmatprep.subr.mxu0 0.0
        %696 = vmatpush1.msra.mxu0 0.0
        %697 = vmatprep.subr.mxu0 0.0
        %698 = vmatpush1.msra.mxu0 %v665
        %699 = vmatprep.subr.mxu0 0.0
        %700 = vmatpush2.msra.mxu0 0.0
        %701 = vmatprep.subr.mxu0 0.0
        %702 = vmatpush2.msra.mxu0 0.0
        %703 = vmatprep.subr.mxu0 0.0
        %704 = vmatpush2.msra.mxu0 0.0
        %705 = vmatprep.subr.mxu0 0.0
        %706 = vmatpush2.msra.mxu0 0.0
        %707 = vmatprep.subr.mxu0 0.0
        %708 = vmatpush2.msra.mxu0 0.0
        %709 = vmatprep.subr.mxu0 0.0
        %710 = vmatpush2.msra.mxu0 0.0
        %711 = vmatprep.subr.mxu0 0.0
        %712 = vmatpush2.msra.mxu0 0.0
        %713 = vmatprep.subr.mxu0 0.0
        %714 = vmatpush2.msra.mxu0 0.0
        %715 = vmatprep.subr.mxu0 0.0
        %716 = vmatpush2.msra.mxu0 0.0
        %717 = vmatprep.subr.mxu0 0.0
        %718 = vmatpush2.msra.mxu0 0.0
        %719 = vmatprep.subr.mxu0 0.0
        %720 = vmatpush2.msra.mxu0 0.0
        %721 = vmatprep.subr.mxu0 0.0
        %722 = vmatpush2.msra.mxu0 0.0
        %723 = vmatprep.subr.mxu0 0.0
        %724 = vmatpush2.msra.mxu0 0.0
        %725 = vmatprep.subr.mxu0 0.0
        %726 = vmatpush2.msra.mxu0 0.0
        %727 = vmatprep.subr.mxu0 0.0
        %728 = vmatpush2.msra.mxu0 0.0
        %729 = vmatprep.subr.mxu0 0.0
        %730 = vmatpush2.msra.mxu0 0.0
        %731 = vmatprep.mubr.f32.mxu0 0.0
        %732 = vmatmul.mubr.f32.gmra.mxu0 %v663
        %v733 = vpop.f32.mrf.mxu0
        %v734 = vadd.f32 0.0, %v733
        %v735 = vpop.f32.mrf.mxu0
        %736 = vdwg.mxu0
        %v737 = vadd.f32 %v657, %v734
        %s738 = scalar_lea.vmem %s1, 56
        %v739 = vld [vmem:[%s738] sm:$0xff]
        %740 = vrot.lane.b32.xlu0 %v174, 118
        %v741 = vpop.permute.xlu0 %740
        %v743 = vsel %vm183, %v739, 0
        %v745 = vsel %vm187, %v741, 0
        %747 = vmatprep.subr.mxu0 0.0
        %748 = vmatpush1.msra.mxu0 0.0
        %749 = vmatprep.subr.mxu0 0.0
        %750 = vmatpush1.msra.mxu0 0.0
        %751 = vmatprep.subr.mxu0 0.0
        %752 = vmatpush1.msra.mxu0 0.0
        %753 = vmatprep.subr.mxu0 0.0
        %754 = vmatpush1.msra.mxu0 0.0
        %755 = vmatprep.subr.mxu0 0.0
        %756 = vmatpush1.msra.mxu0 0.0
        %757 = vmatprep.subr.mxu0 0.0
        %758 = vmatpush1.msra.mxu0 0.0
        %759 = vmatprep.subr.mxu0 0.0
        %760 = vmatpush1.msra.mxu0 0.0
        %761 = vmatprep.subr.mxu0 0.0
        %762 = vmatpush1.msra.mxu0 0.0
        %763 = vmatprep.subr.mxu0 0.0
        %764 = vmatpush1.msra.mxu0 0.0
        %765 = vmatprep.subr.mxu0 0.0
        %766 = vmatpush1.msra.mxu0 0.0
        %767 = vmatprep.subr.mxu0 0.0
        %768 = vmatpush1.msra.mxu0 0.0
        %769 = vmatprep.subr.mxu0 0.0
        %770 = vmatpush1.msra.mxu0 0.0
        %771 = vmatprep.subr.mxu0 0.0
        %772 = vmatpush1.msra.mxu0 0.0
        %773 = vmatprep.subr.mxu0 0.0
        %774 = vmatpush1.msra.mxu0 0.0
        %775 = vmatprep.subr.mxu0 0.0
        %776 = vmatpush1.msra.mxu0 0.0
        %777 = vmatprep.subr.mxu0 0.0
        %778 = vmatpush1.msra.mxu0 %v745
        %779 = vmatprep.subr.mxu0 0.0
        %780 = vmatpush2.msra.mxu0 0.0
        %781 = vmatprep.subr.mxu0 0.0
        %782 = vmatpush2.msra.mxu0 0.0
        %783 = vmatprep.subr.mxu0 0.0
        %784 = vmatpush2.msra.mxu0 0.0
        %785 = vmatprep.subr.mxu0 0.0
        %786 = vmatpush2.msra.mxu0 0.0
        %787 = vmatprep.subr.mxu0 0.0
        %788 = vmatpush2.msra.mxu0 0.0
        %789 = vmatprep.subr.mxu0 0.0
        %790 = vmatpush2.msra.mxu0 0.0
        %791 = vmatprep.subr.mxu0 0.0
        %792 = vmatpush2.msra.mxu0 0.0
        %793 = vmatprep.subr.mxu0 0.0
        %794 = vmatpush2.msra.mxu0 0.0
        %795 = vmatprep.subr.mxu0 0.0
        %796 = vmatpush2.msra.mxu0 0.0
        %797 = vmatprep.subr.mxu0 0.0
        %798 = vmatpush2.msra.mxu0 0.0
        %799 = vmatprep.subr.mxu0 0.0
        %800 = vmatpush2.msra.mxu0 0.0
        %801 = vmatprep.subr.mxu0 0.0
        %802 = vmatpush2.msra.mxu0 0.0
        %803 = vmatprep.subr.mxu0 0.0
        %804 = vmatpush2.msra.mxu0 0.0
        %805 = vmatprep.subr.mxu0 0.0
        %806 = vmatpush2.msra.mxu0 0.0
        %807 = vmatprep.subr.mxu0 0.0
        %808 = vmatpush2.msra.mxu0 0.0
        %809 = vmatprep.subr.mxu0 0.0
        %810 = vmatpush2.msra.mxu0 0.0
        %811 = vmatprep.mubr.f32.mxu0 0.0
        %812 = vmatmul.mubr.f32.gmra.mxu0 %v743
        %v813 = vpop.f32.mrf.mxu0
        %v814 = vadd.f32 0.0, %v813
        %v815 = vpop.f32.mrf.mxu0
        %816 = vdwg.mxu0
        %v817 = vadd.f32 %v737, %v814
        %s818 = scalar_lea.vmem %s1, 64
        %v819 = vld [vmem:[%s818] sm:$0xff]
        %820 = vrot.lane.b32.xlu0 %v176, 118
        %v821 = vpop.permute.xlu0 %820
        %v823 = vsel %vm183, %v819, 0
        %v825 = vsel %vm187, %v821, 0
        %827 = vmatprep.subr.mxu0 0.0
        %828 = vmatpush1.msra.mxu0 0.0
        %829 = vmatprep.subr.mxu0 0.0
        %830 = vmatpush1.msra.mxu0 0.0
        %831 = vmatprep.subr.mxu0 0.0
        %832 = vmatpush1.msra.mxu0 0.0
        %833 = vmatprep.subr.mxu0 0.0
        %834 = vmatpush1.msra.mxu0 0.0
        %835 = vmatprep.subr.mxu0 0.0
        %836 = vmatpush1.msra.mxu0 0.0
        %837 = vmatprep.subr.mxu0 0.0
        %838 = vmatpush1.msra.mxu0 0.0
        %839 = vmatprep.subr.mxu0 0.0
        %840 = vmatpush1.msra.mxu0 0.0
        %841 = vmatprep.subr.mxu0 0.0
        %842 = vmatpush1.msra.mxu0 0.0
        %843 = vmatprep.subr.mxu0 0.0
        %844 = vmatpush1.msra.mxu0 0.0
        %845 = vmatprep.subr.mxu0 0.0
        %846 = vmatpush1.msra.mxu0 0.0
        %847 = vmatprep.subr.mxu0 0.0
        %848 = vmatpush1.msra.mxu0 0.0
        %849 = vmatprep.subr.mxu0 0.0
        %850 = vmatpush1.msra.mxu0 0.0
        %851 = vmatprep.subr.mxu0 0.0
        %852 = vmatpush1.msra.mxu0 0.0
        %853 = vmatprep.subr.mxu0 0.0
        %854 = vmatpush1.msra.mxu0 0.0
        %855 = vmatprep.subr.mxu0 0.0
        %856 = vmatpush1.msra.mxu0 0.0
        %857 = vmatprep.subr.mxu0 0.0
        %858 = vmatpush1.msra.mxu0 %v825
        %859 = vmatprep.subr.mxu0 0.0
        %860 = vmatpush2.msra.mxu0 0.0
        %861 = vmatprep.subr.mxu0 0.0
        %862 = vmatpush2.msra.mxu0 0.0
        %863 = vmatprep.subr.mxu0 0.0
        %864 = vmatpush2.msra.mxu0 0.0
        %865 = vmatprep.subr.mxu0 0.0
        %866 = vmatpush2.msra.mxu0 0.0
        %867 = vmatprep.subr.mxu0 0.0
        %868 = vmatpush2.msra.mxu0 0.0
        %869 = vmatprep.subr.mxu0 0.0
        %870 = vmatpush2.msra.mxu0 0.0
        %871 = vmatprep.subr.mxu0 0.0
        %872 = vmatpush2.msra.mxu0 0.0
        %873 = vmatprep.subr.mxu0 0.0
        %874 = vmatpush2.msra.mxu0 0.0
        %875 = vmatprep.subr.mxu0 0.0
        %876 = vmatpush2.msra.mxu0 0.0
        %877 = vmatprep.subr.mxu0 0.0
        %878 = vmatpush2.msra.mxu0 0.0
        %879 = vmatprep.subr.mxu0 0.0
        %880 = vmatpush2.msra.mxu0 0.0
        %881 = vmatprep.subr.mxu0 0.0
        %882 = vmatpush2.msra.mxu0 0.0
        %883 = vmatprep.subr.mxu0 0.0
        %884 = vmatpush2.msra.mxu0 0.0
        %885 = vmatprep.subr.mxu0 0.0
        %886 = vmatpush2.msra.mxu0 0.0
        %887 = vmatprep.subr.mxu0 0.0
        %888 = vmatpush2.msra.mxu0 0.0
        %889 = vmatprep.subr.mxu0 0.0
        %890 = vmatpush2.msra.mxu0 0.0
        %891 = vmatprep.mubr.f32.mxu0 0.0
        %892 = vmatmul.mubr.f32.gmra.mxu0 %v823
        %v893 = vpop.f32.mrf.mxu0
        %v894 = vadd.f32 0.0, %v893
        %v895 = vpop.f32.mrf.mxu0
        %896 = vdwg.mxu0
        %v897 = vadd.f32 %v817, %v894
        %v899 = vlaneseq
        %v900 = vshrl.u32 %v899, 7
        %v901 = vsub.s32 0, %v900
        %v902 = vrot.slane %v169, %v901
        %v904 = vmul.f32 %v897, %v902
        %vm905 = vcmask 588800
        %v906 = vsel %vm905, %v904, 0.0
        %907 = vadd.xlane.f32.xlu0 %v906
        %v908 = vpop.xlane.xlu0 %907
        %v909 = vsub.f32 %v897, %v908
        %v910 = vmul.f32 %v909, %v909
        %v911 = vmul.f32 %v910, %v902
        %v912 = vsel %vm905, %v911, 0.0
        %913 = vadd.xlane.f32.xlu0 %v912
        %v914 = vpop.xlane.xlu0 %913
        %v915 = vadd.f32 %v914, 1e-05
        %v916 = vrsqrt.pop %v915
        %v917 = vmul.f32 %v909, %v916
        %v918 = vmax.f32 %v917, 0.0
        %919 = vst.msk [vmem:[%s163] sm:$0xff] %vm905, %v918
        %s920 = sand.u32 %s93, 1
        %s921 = scalar_lea.sflag [#allocation3], %s920
        %s922 = sand.u32 %s93, 1
        %s923 = smul.addr %s922, 8
        %s924 = scalar_lea.vmem [#allocation2], %s923
        // Predicated region
        $region33: #{tpu_custom_call.1} parent=31 // pred_check
          %p925 = pneg %p103
        $region34: #{tpu_custom_call.1} parent=31 // pred_check_branch
          %927 = sbr.rel (%p925) target = $region36
        $region35: #{tpu_custom_call.1} parent=31 // pred_region
          %s929 = ssub.s32 128, 128
          %930 = vsyncadd %s921, %s929
          %s931 = smul.addr %s17, 128
          %s932 = scalar_lea.hbm %s3, %s931
          %s934 = sshll.u32 %s924, 4
          %s935 = int_to_ptr.vmem [resolvable:$true] %s934
          %937 = dma.vmem_to_hbm [thread:$0]  %s935, 128, %s932, %s921
        $region36: #{tpu_custom_call.1} parent=31 // pred_fallthru
          _
      $region32: #{tpu_custom_call.1} parent=5 // pred_fallthru
        _
      %p938 = scmp.le.s32.totalorder 2, %s12
      // Predicated region
      $region37: #{tpu_custom_call.1} parent=5 // pred_check
        %p939 = pneg %p938
      $region38: #{tpu_custom_call.1} parent=5 // pred_check_branch
        %941 = sbr.rel (%p939) target = $region40
      $region39: #{tpu_custom_call.1} parent=5 // pred_region
        %s942 = ssub.s32 %s12, 2
        // Predicated region
        $region41: #{tpu_custom_call.1} parent=39 // pred_check
          %p943 = pneg %p109
        $region42: #{tpu_custom_call.1} parent=39 // pred_check_branch
          %945 = sbr.rel (%p943) target = $region44
        $region43: #{tpu_custom_call.1} parent=39 // pred_region
          %s946 = sand.u32 %s94, 1
          %s947 = scalar_lea.sflag [#allocation3], %s946
          %s948 = sand.u32 %s94, 1
          %s949 = smul.addr %s948, 8
          %s950 = scalar_lea.vmem [#allocation2], %s949
          %951 = dma.done %s947, 128
        $region44: #{tpu_custom_call.1} parent=39 // pred_fallthru
          _
      $region40: #{tpu_custom_call.1} parent=5 // pred_fallthru
        _
    $region6: #{tpu_custom_call.1} parent=1 // loop_footer
      %s16 = sadd.s32 1, %s12
    $region7: #{tpu_custom_call.1} parent=1 // loop_footer_branch
      %11 = sbr.rel target = $region3
    $region8: #{tpu_custom_call.1} parent=1 // loop_exit
      _
    %952 = vsyncpa [#allocation3], 1
    %s953 = scalar_lea.sflag [#allocation3], 1
    %954 = vsyncpa %s953, 1

</llo_original>
